<compile_context>
chip_gen: v7x
topology: tpu7x:2x2x1
jax: 0.10.0
libtpu: 0.0.40
codegen_flags: <defaults>
</compile_context>

<pallas_src>
import functools
import math

import jax
import jax.numpy as jnp
from jax.experimental import pallas as pl
from jax.experimental.pallas import tpu as pltpu

QBLOCK = 128  # quantization block size (128x128 fp8 block convention)


def packed_block_linear_kernel(scale_ref, x_ref, w_ref, o_ref, w_deq, acc_ref,
                               *, nkb, nnb, n_nblk):
    # scale_ref : SMEM, flat (K/128 * N/128,) f32 (row-major over (K-blk, N-blk))
    # x_ref     : VMEM (tm, tk) bf16 activations
    # w_ref     : VMEM (tk, tn) float8_e4m3fn weight tile, (K, N) layout
    # o_ref     : VMEM (tm, tn) x.dtype output, resident across the K grid axis
    # w_deq     : VMEM scratch (tk, tn) bf16 — dequantized weight tile
    # acc_ref   : VMEM scratch (tm, tn) f32 — accumulator across K
    j = pl.program_id(1)  # output-feature block index
    k = pl.program_id(2)  # reduction block index

    # Dequantize this weight tile into bf16 scratch, folding the per-128x128
    # scale into the convert (scale applied to the 128x128 weight block, not
    # to the larger (tm,128) partials).  Unrolled at trace time; each
    # iteration's values die at the scratch store, so live ranges stay small.
    for kk in range(nkb):
        rows = pl.ds(kk * QBLOCK, QBLOCK)
        for jj in range(nnb):
            cols = pl.ds(jj * QBLOCK, QBLOCK)
            s = scale_ref[(k * nkb + kk) * n_nblk + (j * nnb + jj)]
            w_deq[rows, cols] = (
                w_ref[rows, cols].astype(jnp.float32) * s
            ).astype(jnp.bfloat16)

    # One deep MXU dot per grid step; accumulate in f32.
    prod = jnp.dot(x_ref[...], w_deq[...], preferred_element_type=jnp.float32)

    @pl.when(k == 0)
    def _first():
        acc_ref[...] = prod          # assign-on-first: no zero-init pass

    @pl.when(k != 0)
    def _accum():
        acc_ref[...] += prod

    @pl.when(k == pl.num_programs(2) - 1)
    def _store():
        o_ref[...] = acc_ref[...].astype(o_ref.dtype)


def prepare_packed_weight(weight, weight_scale_inv):
    """One-time (parameter-load time) repack.

    weight: (N, K) float8_e4m3fn, weight_scale_inv: (N/128, K/128)
    Returns (w_kn, scales_flat): (K, N) fp8 weight and flat f32 scale table
    laid out row-major over (K-block, N-block).
    """
    N, K = weight.shape
    assert N % QBLOCK == 0 and K % QBLOCK == 0, "packed fp8 weights are 128-aligned"
    assert weight_scale_inv.shape == (N // QBLOCK, K // QBLOCK)
    w_kn = weight.T                                              # (K, N) fp8
    scales_flat = weight_scale_inv.T.astype(jnp.float32).reshape(-1)
    return w_kn, scales_flat


def packed_block_linear(x, w_kn, scales_flat, *, tm=256, tn=1024, tk=1024):
    """y = x @ dequant(weight).T with per-(128,128)-block scales.

    x: (M, K)   w_kn: (K, N) float8_e4m3fn (pre-transposed at load time)
    scales_flat: (K/128 * N/128,) f32
    """
    M, K = x.shape
    K2, N = w_kn.shape
    assert K == K2
    assert N % QBLOCK == 0 and K % QBLOCK == 0
    assert scales_flat.shape == ((K // QBLOCK) * (N // QBLOCK),)

    # Clamp tn/tk so they divide N/K while staying multiples of QBLOCK.
    tn = math.gcd(tn, N)
    tk = math.gcd(tk, K)
    # tm: multiple of 16 (bf16 packs (16,128) per vreg); pad M instead of asserting.
    tm = max(16, (min(tm, ((M + 15) // 16) * 16) // 16) * 16)
    M_pad = ((M + tm - 1) // tm) * tm

    # Cast activations to bf16 once (outside the hot loop), pad rows if needed.
    x_p = x.astype(jnp.bfloat16)
    if M_pad != M:
        x_p = jnp.pad(x_p, ((0, M_pad - M), (0, 0)))

    nkb = tk // QBLOCK
    nnb = tn // QBLOCK
    grid = (M_pad // tm, N // tn, K // tk)

    kernel = functools.partial(packed_block_linear_kernel,
                               nkb=nkb, nnb=nnb, n_nblk=N // QBLOCK)

    out = pl.pallas_call(
        kernel,
        out_shape=jax.ShapeDtypeStruct((M_pad, N), x.dtype),
        grid_spec=pltpu.PrefetchScalarGridSpec(
            num_scalar_prefetch=0,
            grid=grid,
            in_specs=[
                # full flat scale table, scalar-indexed from SMEM in the kernel
                pl.BlockSpec(memory_space=pltpu.MemorySpace.SMEM),
                pl.BlockSpec((tm, tk), lambda i, j, k: (i, k)),
                pl.BlockSpec((tk, tn), lambda i, j, k: (k, j)),
            ],
            out_specs=pl.BlockSpec((tm, tn), lambda i, j, k: (i, j)),
            scratch_shapes=[
                pltpu.VMEM((tk, tn), jnp.bfloat16),   # dequantized weight tile
                pltpu.VMEM((tm, tn), jnp.float32),    # f32 accumulator
            ],
        ),
        compiler_params=pltpu.CompilerParams(
            dimension_semantics=("parallel", "parallel", "arbitrary")),
    )(scales_flat, x_p, w_kn)

    if M_pad != M:
        out = out[:M]
    return out


if __name__ == "__main__":
    key = jax.random.PRNGKey(0)
    kx, kw = jax.random.split(key, 2)

    # Small, block-aligned shapes: batch=2, seq=4, in_features=256, out_features=256.
    B, S, K, N = 2, 4, 256, 256
    x = jax.random.normal(kx, (B, S, K), dtype=jnp.float32)

    # Deterministically build a packed-block fp8 weight + inverse scales
    # (mimics the serialized parameters the module stores).
    w_f32 = jax.random.normal(kw, (N, K), dtype=jnp.float32)
    w_blocks = w_f32.reshape(N // QBLOCK, QBLOCK, K // QBLOCK, QBLOCK)
    amax = jnp.max(jnp.abs(w_blocks), axis=(1, 3))                 # (N/128, K/128)
    weight_scale_inv = (amax / 448.0).astype(jnp.float32)          # dequant scale
    w_scaled = w_blocks / weight_scale_inv[:, None, :, None]
    weight = w_scaled.reshape(N, K).astype(jnp.float8_e4m3fn)      # packed fp8 weight

    # One-time (load-time) repack: (N,K) fp8 -> (K,N), scales flattened.
    w_kn, scales_flat = prepare_packed_weight(weight, weight_scale_inv)

    # Run the Pallas kernel.
    x2d = x.reshape(B * S, K)
    y = packed_block_linear(x2d, w_kn, scales_flat)
    y = jax.block_until_ready(y.reshape(B, S, N))

    # Pure-JAX reference: dequantize then dense matmul (all f32).
    w_deq = (weight.astype(jnp.float32)
             .reshape(N // QBLOCK, QBLOCK, K // QBLOCK, QBLOCK)
             * weight_scale_inv[:, None, :, None]).reshape(N, K)
    y_ref = (x2d @ w_deq.T).reshape(B, S, N)

    assert y.shape == (B, S, N) and y.dtype == x.dtype
    # Kernel contracts in bf16 on the MXU (x and the dequantized weights are
    # rounded to bf16; accumulation is f32), so use a max-relative-error check.
    err = jnp.max(jnp.abs(y - y_ref)) / jnp.max(jnp.abs(y_ref))
    assert err < 3e-2, f"mismatch vs reference: rel err {err}"
    print("KERNEL_OK")
</pallas_src>

<mosaic_0001>
module attributes {stable_mosaic.version = 11 : i64} {
  func.func @packed_block_linear_kernel(%arg0: i32, %arg1: i32, %arg2: i32, %arg3: memref<4xf32, #tpu.memory_space<smem>>, %arg4: memref<16x256xbf16, #tpu.memory_space<vmem>>, %arg5: memref<256x256xf8E4M3FN, #tpu.memory_space<vmem>>, %arg6: memref<16x256xf32, #tpu.memory_space<vmem>>, %arg7: memref<256x256xbf16, #tpu.memory_space<vmem>>, %arg8: memref<16x256xf32, #tpu.memory_space<vmem>>) attributes {dimension_semantics = [#tpu.dimension_semantics<parallel>, #tpu.dimension_semantics<parallel>, #tpu.dimension_semantics<arbitrary>], iteration_bounds = array<i64: 1, 1, 1>, scalar_prefetch = 0 : i64, scratch_operands = 2 : i64, tpu.core_type = #tpu.core_type<tc>, window_params = [{transform_indices = @transform_0, window_bounds = array<i64: 4>}, {transform_indices = @transform_1, window_bounds = array<i64: 16, 256>}, {transform_indices = @transform_2, window_bounds = array<i64: 256, 256>}, {transform_indices = @transform_3, window_bounds = array<i64: 16, 256>}]} {
    %c2_i32 = arith.constant 2 : i32
    %0 = arith.muli %arg2, %c2_i32 : i32
    %c0_i32 = arith.constant 0 : i32
    %1 = arith.addi %0, %c0_i32 : i32
    %c2_i32_0 = arith.constant 2 : i32
    %2 = arith.muli %1, %c2_i32_0 : i32
    %c2_i32_1 = arith.constant 2 : i32
    %3 = arith.muli %arg1, %c2_i32_1 : i32
    %c0_i32_2 = arith.constant 0 : i32
    %4 = arith.addi %3, %c0_i32_2 : i32
    %5 = arith.addi %2, %4 : i32
    %6 = arith.index_cast %5 : i32 to index
    %7 = memref.load %arg3[%6] : memref<4xf32, #tpu.memory_space<smem>>
    %c0 = arith.constant 0 : index
    %c0_3 = arith.constant 0 : index
    %8 = vector.load %arg5[%c0, %c0_3] : memref<256x256xf8E4M3FN, #tpu.memory_space<vmem>>, vector<128x128xf8E4M3FN>
    %9 = arith.extf %8 : vector<128x128xf8E4M3FN> to vector<128x128xf32>
    %10 = vector.broadcast %7 : f32 to vector<128x128xf32>
    %11 = arith.mulf %9, %10 : vector<128x128xf32>
    %12 = arith.truncf %11 : vector<128x128xf32> to vector<128x128xbf16>
    %c0_4 = arith.constant 0 : index
    %c0_5 = arith.constant 0 : index
    %13 = vector.load %arg7[%c0_4, %c0_5] : memref<256x256xbf16, #tpu.memory_space<vmem>>, vector<128x128xbf16>
    tpu.vector_store %arg7[%c0_4, %c0_5], %12 {strides = array<i32>} : memref<256x256xbf16, #tpu.memory_space<vmem>>, vector<128x128xbf16>,
    %c2_i32_6 = arith.constant 2 : i32
    %14 = arith.muli %arg2, %c2_i32_6 : i32
    %c0_i32_7 = arith.constant 0 : i32
    %15 = arith.addi %14, %c0_i32_7 : i32
    %c2_i32_8 = arith.constant 2 : i32
    %16 = arith.muli %15, %c2_i32_8 : i32
    %c2_i32_9 = arith.constant 2 : i32
    %17 = arith.muli %arg1, %c2_i32_9 : i32
    %c1_i32 = arith.constant 1 : i32
    %18 = arith.addi %17, %c1_i32 : i32
    %19 = arith.addi %16, %18 : i32
    %20 = arith.index_cast %19 : i32 to index
    %21 = memref.load %arg3[%20] : memref<4xf32, #tpu.memory_space<smem>>
    %c0_10 = arith.constant 0 : index
    %c128 = arith.constant 128 : index
    %22 = vector.load %arg5[%c0_10, %c128] : memref<256x256xf8E4M3FN, #tpu.memory_space<vmem>>, vector<128x128xf8E4M3FN>
    %23 = arith.extf %22 : vector<128x128xf8E4M3FN> to vector<128x128xf32>
    %24 = vector.broadcast %21 : f32 to vector<128x128xf32>
    %25 = arith.mulf %23, %24 : vector<128x128xf32>
    %26 = arith.truncf %25 : vector<128x128xf32> to vector<128x128xbf16>
    %c0_11 = arith.constant 0 : index
    %c128_12 = arith.constant 128 : index
    %27 = vector.load %arg7[%c0_11, %c128_12] : memref<256x256xbf16, #tpu.memory_space<vmem>>, vector<128x128xbf16>
    tpu.vector_store %arg7[%c0_11, %c128_12], %26 {strides = array<i32>} : memref<256x256xbf16, #tpu.memory_space<vmem>>, vector<128x128xbf16>,
    %c2_i32_13 = arith.constant 2 : i32
    %28 = arith.muli %arg2, %c2_i32_13 : i32
    %c1_i32_14 = arith.constant 1 : i32
    %29 = arith.addi %28, %c1_i32_14 : i32
    %c2_i32_15 = arith.constant 2 : i32
    %30 = arith.muli %29, %c2_i32_15 : i32
    %c2_i32_16 = arith.constant 2 : i32
    %31 = arith.muli %arg1, %c2_i32_16 : i32
    %c0_i32_17 = arith.constant 0 : i32
    %32 = arith.addi %31, %c0_i32_17 : i32
    %33 = arith.addi %30, %32 : i32
    %34 = arith.index_cast %33 : i32 to index
    %35 = memref.load %arg3[%34] : memref<4xf32, #tpu.memory_space<smem>>
    %c128_18 = arith.constant 128 : index
    %c0_19 = arith.constant 0 : index
    %36 = vector.load %arg5[%c128_18, %c0_19] : memref<256x256xf8E4M3FN, #tpu.memory_space<vmem>>, vector<128x128xf8E4M3FN>
    %37 = arith.extf %36 : vector<128x128xf8E4M3FN> to vector<128x128xf32>
    %38 = vector.broadcast %35 : f32 to vector<128x128xf32>
    %39 = arith.mulf %37, %38 : vector<128x128xf32>
    %40 = arith.truncf %39 : vector<128x128xf32> to vector<128x128xbf16>
    %c128_20 = arith.constant 128 : index
    %c0_21 = arith.constant 0 : index
    %41 = vector.load %arg7[%c128_20, %c0_21] : memref<256x256xbf16, #tpu.memory_space<vmem>>, vector<128x128xbf16>
    tpu.vector_store %arg7[%c128_20, %c0_21], %40 {strides = array<i32>} : memref<256x256xbf16, #tpu.memory_space<vmem>>, vector<128x128xbf16>,
    %c2_i32_22 = arith.constant 2 : i32
    %42 = arith.muli %arg2, %c2_i32_22 : i32
    %c1_i32_23 = arith.constant 1 : i32
    %43 = arith.addi %42, %c1_i32_23 : i32
    %c2_i32_24 = arith.constant 2 : i32
    %44 = arith.muli %43, %c2_i32_24 : i32
    %c2_i32_25 = arith.constant 2 : i32
    %45 = arith.muli %arg1, %c2_i32_25 : i32
    %c1_i32_26 = arith.constant 1 : i32
    %46 = arith.addi %45, %c1_i32_26 : i32
    %47 = arith.addi %44, %46 : i32
    %48 = arith.index_cast %47 : i32 to index
    %49 = memref.load %arg3[%48] : memref<4xf32, #tpu.memory_space<smem>>
    %c128_27 = arith.constant 128 : index
    %c128_28 = arith.constant 128 : index
    %50 = vector.load %arg5[%c128_27, %c128_28] : memref<256x256xf8E4M3FN, #tpu.memory_space<vmem>>, vector<128x128xf8E4M3FN>
    %51 = arith.extf %50 : vector<128x128xf8E4M3FN> to vector<128x128xf32>
    %52 = vector.broadcast %49 : f32 to vector<128x128xf32>
    %53 = arith.mulf %51, %52 : vector<128x128xf32>
    %54 = arith.truncf %53 : vector<128x128xf32> to vector<128x128xbf16>
    %c128_29 = arith.constant 128 : index
    %c128_30 = arith.constant 128 : index
    %55 = vector.load %arg7[%c128_29, %c128_30] : memref<256x256xbf16, #tpu.memory_space<vmem>>, vector<128x128xbf16>
    tpu.vector_store %arg7[%c128_29, %c128_30], %54 {strides = array<i32>} : memref<256x256xbf16, #tpu.memory_space<vmem>>, vector<128x128xbf16>,
    %c0_31 = arith.constant 0 : index
    %c0_32 = arith.constant 0 : index
    %56 = vector.load %arg4[%c0_31, %c0_32] : memref<16x256xbf16, #tpu.memory_space<vmem>>, vector<16x256xbf16>
    %c0_33 = arith.constant 0 : index
    %c0_34 = arith.constant 0 : index
    %57 = vector.load %arg7[%c0_33, %c0_34] : memref<256x256xbf16, #tpu.memory_space<vmem>>, vector<256x256xbf16>
    %cst = arith.constant dense<0.000000e+00> : vector<16x256xf32>
    %58 = tpu.matmul %56, %57, %cst {dimension_numbers = #tpu.dot_dimension_numbers<[1], [0], [0], [1], [0, 0, 1, 1], [], []>} : vector<16x256xbf16>, vector<256x256xbf16>, vector<16x256xf32> -> vector<16x256xf32>
    %c0_i32_35 = arith.constant 0 : i32
    %59 = arith.cmpi eq, %arg2, %c0_i32_35 : i32
    %60 = arith.extui %59 : i1 to i32
    %c0_i32_36 = arith.constant 0 : i32
    %61 = arith.cmpi ne, %60, %c0_i32_36 : i32
    scf.if %61 {
      %c0_41 = arith.constant 0 : index
      %c0_42 = arith.constant 0 : index
      %68 = vector.load %arg8[%c0_41, %c0_42] : memref<16x256xf32, #tpu.memory_space<vmem>>, vector<16x256xf32>
      tpu.vector_store %arg8[%c0_41, %c0_42], %58 {strides = array<i32>} : memref<16x256xf32, #tpu.memory_space<vmem>>, vector<16x256xf32>,
    } else {
    }
    %c0_i32_37 = arith.constant 0 : i32
    %62 = arith.cmpi ne, %arg2, %c0_i32_37 : i32
    %63 = arith.extui %62 : i1 to i32
    %c0_i32_38 = arith.constant 0 : i32
    %64 = arith.cmpi ne, %63, %c0_i32_38 : i32
    scf.if %64 {
      %c0_41 = arith.constant 0 : index
      %c0_42 = arith.constant 0 : index
      %68 = vector.load %arg8[%c0_41, %c0_42] : memref<16x256xf32, #tpu.memory_space<vmem>>, vector<16x256xf32>
      %69 = arith.addf %68, %58 : vector<16x256xf32>
      %c0_43 = arith.constant 0 : index
      %c0_44 = arith.constant 0 : index
      %70 = vector.load %arg8[%c0_43, %c0_44] : memref<16x256xf32, #tpu.memory_space<vmem>>, vector<16x256xf32>
      tpu.vector_store %arg8[%c0_43, %c0_44], %69 {strides = array<i32>} : memref<16x256xf32, #tpu.memory_space<vmem>>, vector<16x256xf32>,
    } else {
    }
    %c0_i32_39 = arith.constant 0 : i32
    %65 = arith.cmpi eq, %arg2, %c0_i32_39 : i32
    %66 = arith.extui %65 : i1 to i32
    %c0_i32_40 = arith.constant 0 : i32
    %67 = arith.cmpi ne, %66, %c0_i32_40 : i32
    scf.if %67 {
      %c0_41 = arith.constant 0 : index
      %c0_42 = arith.constant 0 : index
      %68 = vector.load %arg8[%c0_41, %c0_42] : memref<16x256xf32, #tpu.memory_space<vmem>>, vector<16x256xf32>
      %c0_43 = arith.constant 0 : index
      %c0_44 = arith.constant 0 : index
      %69 = vector.load %arg6[%c0_43, %c0_44] : memref<16x256xf32, #tpu.memory_space<vmem>>, vector<16x256xf32>
      tpu.vector_store %arg6[%c0_43, %c0_44], %68 {strides = array<i32>} : memref<16x256xf32, #tpu.memory_space<vmem>>, vector<16x256xf32>,
    } else {
    }
    return
  }
  func.func @transform_0(%arg0: i32, %arg1: i32, %arg2: i32) -> i32 {
    %c0_i32 = arith.constant 0 : i32
    %c0_i32_0 = arith.constant 0 : i32
    return %c0_i32 : i32
  }
  func.func @transform_1(%arg0: i32, %arg1: i32, %arg2: i32) -> (i32, i32) {
    %c0_i32 = arith.constant 0 : i32
    return %arg0, %arg2 : i32, i32
  }
  func.func @transform_2(%arg0: i32, %arg1: i32, %arg2: i32) -> (i32, i32) {
    %c0_i32 = arith.constant 0 : i32
    return %arg2, %arg1 : i32, i32
  }
  func.func @transform_3(%arg0: i32, %arg1: i32, %arg2: i32) -> (i32, i32) {
    %c0_i32 = arith.constant 0 : i32
    return %arg0, %arg1 : i32, i32
  }
}

</mosaic_0001>

<llo_original>
// kernel: tpu_custom_call.1
$region0: #{tpu_custom_call.1}
  #allocation0 [shape = 'u32[]', space=smem, size = 0x4, offset = 0x4, fixed_abs, tag = 'smem constant byte address 0x4 - core index']
  #allocation1 [shape = 'u32[144,128]{1,0:T(1,128)}', space=vmem, size = 0x12000, scoped, tag = 'internal scratch']
  #allocation2 [shape = 'bf16[256,256]{1,0:T(16,128)(2,1)}', space=vmem, size = 0x20000, scoped, tag = 'scratch operand']
  #allocation3 [shape = 'f32[16,256]{1,0:T(8,128)}', space=vmem, size = 0x4000, scoped, tag = 'scratch operand']
  %s0 = inlined_call_operand.hbm [shape: f32[4], index: 0, kind: input, shape index: {}]
  %s1 = inlined_call_operand.hbm [shape: bf16[16,256], index: 1, kind: input, shape index: {}]
  %s2 = inlined_call_operand.hbm [shape: f8e4m3fn[256,256], index: 2, kind: input, shape index: {}]
  %s3 = inlined_call_operand.hbm [shape: f32[16,256], index: 3, kind: output, shape index: {}]
  %s4 = sld [smem:[#allocation0]]
  $region46: #{tpu_custom_call.1} parent=0
    _
  %s6 = ssub.s32 1, %s4
  %s7 = scalar_select 0, %s6, %s4
  $region1: #{tpu_custom_call.1} parent=0
    #allocation4 [shape = 'u8[512]{0}', space=smem, size = 0x200, scoped, tag = 'input window, operand 0, single buffered']
    #allocation5 [shape = 's32[1]{0}', space=sflag, size = 0x4, scoped, tag = 'scoped memory for tpu_custom_call.1']
    #allocation6 [shape = 's32[1]{0}', space=sflag, size = 0x4, scoped, tag = 'scoped memory for tpu_custom_call.1']
    #allocation7 [shape = 's32[1]{0}', space=sflag, size = 0x4, scoped, tag = 'scoped memory for tpu_custom_call.1']
    #allocation8 [shape = 'u8[8192]{0}', space=vmem, size = 0x2000, scoped, tag = 'input window, operand 1, single buffered']
    #allocation9 [shape = 'u8[65536]{0}', space=vmem, size = 0x10000, scoped, tag = 'input window, operand 2, single buffered']
    #allocation10 [shape = 's32[1]{0}', space=sflag, size = 0x4, scoped, tag = 'scoped memory for tpu_custom_call.1']
    #allocation11 [shape = 'u8[16384]{0}', space=vmem, size = 0x4000, scoped, tag = 'output window, operand 0, single buffered']
    %8 = vsyncpa [#allocation7], 0
    %9 = vsyncpa [#allocation5], 0
    %10 = vsyncpa [#allocation10], 0
    %11 = vsyncpa [#allocation6], 0
    // Predicated region
    $region2: #{tpu_custom_call.1} parent=1 // pred_check
      _
    $region3: #{tpu_custom_call.1} parent=1 // pred_check_branch
      %13 = sbr.rel (0) target = $region5
    $region4: #{tpu_custom_call.1} parent=1 // pred_region
      %s15 = ssub.s32 16, 16
      %16 = vsyncadd [#allocation7], %s15
      %19 = dma.hbm_to_smem %s0, 16, [#allocation4], [#allocation7]
    $region5: #{tpu_custom_call.1} parent=1 // pred_fallthru
      _
    // Predicated region
    $region6: #{tpu_custom_call.1} parent=1 // pred_check
      _
    $region7: #{tpu_custom_call.1} parent=1 // pred_check_branch
      %21 = sbr.rel (0) target = $region9
    $region8: #{tpu_custom_call.1} parent=1 // pred_region
      %s23 = ssub.s32 256, 256
      %24 = vsyncadd [#allocation5], %s23
      %s25 = sshll.u32 [#allocation8], 4
      %s26 = int_to_ptr.vmem [resolvable:$true] %s25
      %31 = dma.hbm_to_vmem [thread:$0]  %s1, 256, %s26, [#allocation5], 128, 128, 8
    $region9: #{tpu_custom_call.1} parent=1 // pred_fallthru
      _
    // Predicated region
    $region10: #{tpu_custom_call.1} parent=1 // pred_check
      _
    $region11: #{tpu_custom_call.1} parent=1 // pred_check_branch
      %33 = sbr.rel (0) target = $region13
    $region12: #{tpu_custom_call.1} parent=1 // pred_region
      %s35 = ssub.s32 2048, 2048
      %36 = vsyncadd [#allocation10], %s35
      %s37 = sshll.u32 [#allocation9], 4
      %s38 = int_to_ptr.vmem [resolvable:$true] %s37
      %43 = dma.hbm_to_vmem [thread:$0]  %s2, 2048, %s38, [#allocation10], 256, 256, 16
    $region13: #{tpu_custom_call.1} parent=1 // pred_fallthru
      _
    // Predicated region
    $region14: #{tpu_custom_call.1} parent=1 // pred_check
      _
    $region15: #{tpu_custom_call.1} parent=1 // pred_check_branch
      %45 = sbr.rel (0) target = $region17
    $region16: #{tpu_custom_call.1} parent=1 // pred_region
      %46 = dma.done [#allocation7], 16
    $region17: #{tpu_custom_call.1} parent=1 // pred_fallthru
      _
    // Predicated region
    $region18: #{tpu_custom_call.1} parent=1 // pred_check
      _
    $region19: #{tpu_custom_call.1} parent=1 // pred_check_branch
      %48 = sbr.rel (0) target = $region21
    $region20: #{tpu_custom_call.1} parent=1 // pred_region
      %49 = dma.done [#allocation5], 256
    $region21: #{tpu_custom_call.1} parent=1 // pred_fallthru
      _
    // Predicated region
    $region22: #{tpu_custom_call.1} parent=1 // pred_check
      _
    $region23: #{tpu_custom_call.1} parent=1 // pred_check_branch
      %51 = sbr.rel (0) target = $region25
    $region24: #{tpu_custom_call.1} parent=1 // pred_region
      %52 = dma.done [#allocation10], 2048
    $region25: #{tpu_custom_call.1} parent=1 // pred_fallthru
      _
    %53 = sfence
    %s54 = smul.u32 0, 4
    %s55 = smul.u32 0, 2
    %s56 = sadd.s32 %s54, %s55
    %s57 = sld [smem:[#allocation4 + %s56]]
    %v58 = vld [vmem:[#allocation9] sm:$0xff]
    %v59 = vld [vmem:[#allocation9 + $0x10] sm:$0xff]
    %v60 = vld [vmem:[#allocation9 + $0x20] sm:$0xff]
    %v61 = vld [vmem:[#allocation9 + $0x30] sm:$0xff]
    %v62 = vunpack.c.0.f8e4m3fn %v58
    %v63 = vunpack.c.1.f8e4m3fn %v58
    %v64 = vunpack.c.2.f8e4m3fn %v58
    %v65 = vunpack.c.3.f8e4m3fn %v58
    %v66 = vunpack.c.0.f8e4m3fn %v59
    %v67 = vunpack.c.1.f8e4m3fn %v59
    %v68 = vunpack.c.2.f8e4m3fn %v59
    %v69 = vunpack.c.3.f8e4m3fn %v59
    %v70 = vunpack.c.0.f8e4m3fn %v60
    %v71 = vunpack.c.1.f8e4m3fn %v60
    %v72 = vunpack.c.2.f8e4m3fn %v60
    %v73 = vunpack.c.3.f8e4m3fn %v60
    %v74 = vunpack.c.0.f8e4m3fn %v61
    %v75 = vunpack.c.1.f8e4m3fn %v61
    %v76 = vunpack.c.2.f8e4m3fn %v61
    %v77 = vunpack.c.3.f8e4m3fn %v61
    %v78 = vstv %s57
    %v79 = vmul.f32 %v62, %v78
    %v80 = vmul.f32 %v63, %v78
    %v81 = vmul.f32 %v64, %v78
    %v82 = vmul.f32 %v65, %v78
    %v83 = vmul.f32 %v66, %v78
    %v84 = vmul.f32 %v67, %v78
    %v85 = vmul.f32 %v68, %v78
    %v86 = vmul.f32 %v69, %v78
    %v87 = vmul.f32 %v70, %v78
    %v88 = vmul.f32 %v71, %v78
    %v89 = vmul.f32 %v72, %v78
    %v90 = vmul.f32 %v73, %v78
    %v91 = vmul.f32 %v74, %v78
    %v92 = vmul.f32 %v75, %v78
    %v93 = vmul.f32 %v76, %v78
    %v94 = vmul.f32 %v77, %v78
    %v95 = vpack.c.bf16 %v80, %v79
    %v96 = vpack.c.bf16 %v82, %v81
    %v97 = vpack.c.bf16 %v84, %v83
    %v98 = vpack.c.bf16 %v86, %v85
    %v99 = vpack.c.bf16 %v88, %v87
    %v100 = vpack.c.bf16 %v90, %v89
    %v101 = vpack.c.bf16 %v92, %v91
    %v102 = vpack.c.bf16 %v94, %v93
    %103 = vst [vmem:[#allocation2] sm:$0xff] %v95
    %104 = vst [vmem:[#allocation2 + $0x10] sm:$0xff] %v96
    %105 = vst [vmem:[#allocation2 + $0x20] sm:$0xff] %v97
    %106 = vst [vmem:[#allocation2 + $0x30] sm:$0xff] %v98
    %107 = vst [vmem:[#allocation2 + $0x40] sm:$0xff] %v99
    %108 = vst [vmem:[#allocation2 + $0x50] sm:$0xff] %v100
    %109 = vst [vmem:[#allocation2 + $0x60] sm:$0xff] %v101
    %110 = vst [vmem:[#allocation2 + $0x70] sm:$0xff] %v102
    %s111 = sadd.s32 %s55, 1
    %s112 = sadd.s32 %s54, %s111
    %s113 = sld [smem:[#allocation4 + %s112]]
    %v114 = vld [vmem:[#allocation9 + $0x8] sm:$0xff]
    %v115 = vld [vmem:[#allocation9 + $0x18] sm:$0xff]
    %v116 = vld [vmem:[#allocation9 + $0x28] sm:$0xff]
    %v117 = vld [vmem:[#allocation9 + $0x38] sm:$0xff]
    %v118 = vunpack.c.0.f8e4m3fn %v114
    %v119 = vunpack.c.1.f8e4m3fn %v114
    %v120 = vunpack.c.2.f8e4m3fn %v114
    %v121 = vunpack.c.3.f8e4m3fn %v114
    %v122 = vunpack.c.0.f8e4m3fn %v115
    %v123 = vunpack.c.1.f8e4m3fn %v115
    %v124 = vunpack.c.2.f8e4m3fn %v115
    %v125 = vunpack.c.3.f8e4m3fn %v115
    %v126 = vunpack.c.0.f8e4m3fn %v116
    %v127 = vunpack.c.1.f8e4m3fn %v116
    %v128 = vunpack.c.2.f8e4m3fn %v116
    %v129 = vunpack.c.3.f8e4m3fn %v116
    %v130 = vunpack.c.0.f8e4m3fn %v117
    %v131 = vunpack.c.1.f8e4m3fn %v117
    %v132 = vunpack.c.2.f8e4m3fn %v117
    %v133 = vunpack.c.3.f8e4m3fn %v117
    %v134 = vstv %s113
    %v135 = vmul.f32 %v118, %v134
    %v136 = vmul.f32 %v119, %v134
    %v137 = vmul.f32 %v120, %v134
    %v138 = vmul.f32 %v121, %v134
    %v139 = vmul.f32 %v122, %v134
    %v140 = vmul.f32 %v123, %v134
    %v141 = vmul.f32 %v124, %v134
    %v142 = vmul.f32 %v125, %v134
    %v143 = vmul.f32 %v126, %v134
    %v144 = vmul.f32 %v127, %v134
    %v145 = vmul.f32 %v128, %v134
    %v146 = vmul.f32 %v129, %v134
    %v147 = vmul.f32 %v130, %v134
    %v148 = vmul.f32 %v131, %v134
    %v149 = vmul.f32 %v132, %v134
    %v150 = vmul.f32 %v133, %v134
    %v151 = vpack.c.bf16 %v136, %v135
    %v152 = vpack.c.bf16 %v138, %v137
    %v153 = vpack.c.bf16 %v140, %v139
    %v154 = vpack.c.bf16 %v142, %v141
    %v155 = vpack.c.bf16 %v144, %v143
    %v156 = vpack.c.bf16 %v146, %v145
    %v157 = vpack.c.bf16 %v148, %v147
    %v158 = vpack.c.bf16 %v150, %v149
    %159 = vst [vmem:[#allocation2 + $0x8] sm:$0xff] %v151
    %160 = vst [vmem:[#allocation2 + $0x18] sm:$0xff] %v152
    %161 = vst [vmem:[#allocation2 + $0x28] sm:$0xff] %v153
    %162 = vst [vmem:[#allocation2 + $0x38] sm:$0xff] %v154
    %163 = vst [vmem:[#allocation2 + $0x48] sm:$0xff] %v155
    %164 = vst [vmem:[#allocation2 + $0x58] sm:$0xff] %v156
    %165 = vst [vmem:[#allocation2 + $0x68] sm:$0xff] %v157
    %166 = vst [vmem:[#allocation2 + $0x78] sm:$0xff] %v158
    %s167 = smul.u32 0, 2
    %s168 = sadd.s32 %s167, 1
    %s169 = smul.u32 %s168, 2
    %s170 = sadd.s32 %s169, %s55
    %s171 = sld [smem:[#allocation4 + %s170]]
    %v172 = vld [vmem:[#allocation9 + $0x40] sm:$0xff]
    %v173 = vld [vmem:[#allocation9 + $0x50] sm:$0xff]
    %v174 = vld [vmem:[#allocation9 + $0x60] sm:$0xff]
    %v175 = vld [vmem:[#allocation9 + $0x70] sm:$0xff]
    %v176 = vunpack.c.0.f8e4m3fn %v172
    %v177 = vunpack.c.1.f8e4m3fn %v172
    %v178 = vunpack.c.2.f8e4m3fn %v172
    %v179 = vunpack.c.3.f8e4m3fn %v172
    %v180 = vunpack.c.0.f8e4m3fn %v173
    %v181 = vunpack.c.1.f8e4m3fn %v173
    %v182 = vunpack.c.2.f8e4m3fn %v173
    %v183 = vunpack.c.3.f8e4m3fn %v173
    %v184 = vunpack.c.0.f8e4m3fn %v174
    %v185 = vunpack.c.1.f8e4m3fn %v174
    %v186 = vunpack.c.2.f8e4m3fn %v174
    %v187 = vunpack.c.3.f8e4m3fn %v174
    %v188 = vunpack.c.0.f8e4m3fn %v175
    %v189 = vunpack.c.1.f8e4m3fn %v175
    %v190 = vunpack.c.2.f8e4m3fn %v175
    %v191 = vunpack.c.3.f8e4m3fn %v175
    %v192 = vstv %s171
    %v193 = vmul.f32 %v176, %v192
    %v194 = vmul.f32 %v177, %v192
    %v195 = vmul.f32 %v178, %v192
    %v196 = vmul.f32 %v179, %v192
    %v197 = vmul.f32 %v180, %v192
    %v198 = vmul.f32 %v181, %v192
    %v199 = vmul.f32 %v182, %v192
    %v200 = vmul.f32 %v183, %v192
    %v201 = vmul.f32 %v184, %v192
    %v202 = vmul.f32 %v185, %v192
    %v203 = vmul.f32 %v186, %v192
    %v204 = vmul.f32 %v187, %v192
    %v205 = vmul.f32 %v188, %v192
    %v206 = vmul.f32 %v189, %v192
    %v207 = vmul.f32 %v190, %v192
    %v208 = vmul.f32 %v191, %v192
    %v209 = vpack.c.bf16 %v194, %v193
    %v210 = vpack.c.bf16 %v196, %v195
    %v211 = vpack.c.bf16 %v198, %v197
    %v212 = vpack.c.bf16 %v200, %v199
    %v213 = vpack.c.bf16 %v202, %v201
    %v214 = vpack.c.bf16 %v204, %v203
    %v215 = vpack.c.bf16 %v206, %v205
    %v216 = vpack.c.bf16 %v208, %v207
    %217 = vst [vmem:[#allocation2 + $0x80] sm:$0xff] %v209
    %218 = vst [vmem:[#allocation2 + $0x90] sm:$0xff] %v210
    %219 = vst [vmem:[#allocation2 + $0xa0] sm:$0xff] %v211
    %220 = vst [vmem:[#allocation2 + $0xb0] sm:$0xff] %v212
    %221 = vst [vmem:[#allocation2 + $0xc0] sm:$0xff] %v213
    %222 = vst [vmem:[#allocation2 + $0xd0] sm:$0xff] %v214
    %223 = vst [vmem:[#allocation2 + $0xe0] sm:$0xff] %v215
    %224 = vst [vmem:[#allocation2 + $0xf0] sm:$0xff] %v216
    %s225 = sadd.s32 %s169, %s111
    %s226 = sld [smem:[#allocation4 + %s225]]
    %v227 = vld [vmem:[#allocation9 + $0x48] sm:$0xff]
    %v228 = vld [vmem:[#allocation9 + $0x58] sm:$0xff]
    %v229 = vld [vmem:[#allocation9 + $0x68] sm:$0xff]
    %v230 = vld [vmem:[#allocation9 + $0x78] sm:$0xff]
    %v231 = vunpack.c.0.f8e4m3fn %v227
    %v232 = vunpack.c.1.f8e4m3fn %v227
    %v233 = vunpack.c.2.f8e4m3fn %v227
    %v234 = vunpack.c.3.f8e4m3fn %v227
    %v235 = vunpack.c.0.f8e4m3fn %v228
    %v236 = vunpack.c.1.f8e4m3fn %v228
    %v237 = vunpack.c.2.f8e4m3fn %v228
    %v238 = vunpack.c.3.f8e4m3fn %v228
    %v239 = vunpack.c.0.f8e4m3fn %v229
    %v240 = vunpack.c.1.f8e4m3fn %v229
    %v241 = vunpack.c.2.f8e4m3fn %v229
    %v242 = vunpack.c.3.f8e4m3fn %v229
    %v243 = vunpack.c.0.f8e4m3fn %v230
    %v244 = vunpack.c.1.f8e4m3fn %v230
    %v245 = vunpack.c.2.f8e4m3fn %v230
    %v246 = vunpack.c.3.f8e4m3fn %v230
    %v247 = vstv %s226
    %v248 = vmul.f32 %v231, %v247
    %v249 = vmul.f32 %v232, %v247
    %v250 = vmul.f32 %v233, %v247
    %v251 = vmul.f32 %v234, %v247
    %v252 = vmul.f32 %v235, %v247
    %v253 = vmul.f32 %v236, %v247
    %v254 = vmul.f32 %v237, %v247
    %v255 = vmul.f32 %v238, %v247
    %v256 = vmul.f32 %v239, %v247
    %v257 = vmul.f32 %v240, %v247
    %v258 = vmul.f32 %v241, %v247
    %v259 = vmul.f32 %v242, %v247
    %v260 = vmul.f32 %v243, %v247
    %v261 = vmul.f32 %v244, %v247
    %v262 = vmul.f32 %v245, %v247
    %v263 = vmul.f32 %v246, %v247
    %v264 = vpack.c.bf16 %v249, %v248
    %v265 = vpack.c.bf16 %v251, %v250
    %v266 = vpack.c.bf16 %v253, %v252
    %v267 = vpack.c.bf16 %v255, %v254
    %v268 = vpack.c.bf16 %v257, %v256
    %v269 = vpack.c.bf16 %v259, %v258
    %v270 = vpack.c.bf16 %v261, %v260
    %v271 = vpack.c.bf16 %v263, %v262
    %272 = vst [vmem:[#allocation2 + $0x88] sm:$0xff] %v264
    %273 = vst [vmem:[#allocation2 + $0x98] sm:$0xff] %v265
    %274 = vst [vmem:[#allocation2 + $0xa8] sm:$0xff] %v266
    %275 = vst [vmem:[#allocation2 + $0xb8] sm:$0xff] %v267
    %276 = vst [vmem:[#allocation2 + $0xc8] sm:$0xff] %v268
    %277 = vst [vmem:[#allocation2 + $0xd8] sm:$0xff] %v269
    %278 = vst [vmem:[#allocation2 + $0xe8] sm:$0xff] %v270
    %279 = vst [vmem:[#allocation2 + $0xf8] sm:$0xff] %v271
    %v280 = vld [vmem:[#allocation8] sm:$0xff]
    %v281 = vld [vmem:[#allocation8 + $0x8] sm:$0xff]
    %v282 = vld [vmem:[#allocation2] sm:$0xff]
    %v283 = vld [vmem:[#allocation2 + $0x8] sm:$0xff]
    %v284 = vld [vmem:[#allocation2 + $0x10] sm:$0xff]
    %v285 = vld [vmem:[#allocation2 + $0x18] sm:$0xff]
    %v286 = vld [vmem:[#allocation2 + $0x20] sm:$0xff]
    %v287 = vld [vmem:[#allocation2 + $0x28] sm:$0xff]
    %v288 = vld [vmem:[#allocation2 + $0x30] sm:$0xff]
    %v289 = vld [vmem:[#allocation2 + $0x38] sm:$0xff]
    %v290 = vld [vmem:[#allocation2 + $0x40] sm:$0xff]
    %v291 = vld [vmem:[#allocation2 + $0x48] sm:$0xff]
    %v292 = vld [vmem:[#allocation2 + $0x50] sm:$0xff]
    %v293 = vld [vmem:[#allocation2 + $0x58] sm:$0xff]
    %v294 = vld [vmem:[#allocation2 + $0x60] sm:$0xff]
    %v295 = vld [vmem:[#allocation2 + $0x68] sm:$0xff]
    %v296 = vld [vmem:[#allocation2 + $0x70] sm:$0xff]
    %v297 = vld [vmem:[#allocation2 + $0x78] sm:$0xff]
    %v298 = vld [vmem:[#allocation2 + $0x80] sm:$0xff]
    %v299 = vld [vmem:[#allocation2 + $0x88] sm:$0xff]
    %v300 = vld [vmem:[#allocation2 + $0x90] sm:$0xff]
    %v301 = vld [vmem:[#allocation2 + $0x98] sm:$0xff]
    %v302 = vld [vmem:[#allocation2 + $0xa0] sm:$0xff]
    %v303 = vld [vmem:[#allocation2 + $0xa8] sm:$0xff]
    %v304 = vld [vmem:[#allocation2 + $0xb0] sm:$0xff]
    %v305 = vld [vmem:[#allocation2 + $0xb8] sm:$0xff]
    %v306 = vld [vmem:[#allocation2 + $0xc0] sm:$0xff]
    %v307 = vld [vmem:[#allocation2 + $0xc8] sm:$0xff]
    %v308 = vld [vmem:[#allocation2 + $0xd0] sm:$0xff]
    %v309 = vld [vmem:[#allocation2 + $0xd8] sm:$0xff]
    %v310 = vld [vmem:[#allocation2 + $0xe0] sm:$0xff]
    %v311 = vld [vmem:[#allocation2 + $0xe8] sm:$0xff]
    %v312 = vld [vmem:[#allocation2 + $0xf0] sm:$0xff]
    %v313 = vld [vmem:[#allocation2 + $0xf8] sm:$0xff]
    %v316 = vunpack.c.l.b16 %v280
    %v317 = vunpack.c.h.b16 %v280
    %v318 = vunpack.c.l.b16 %v281
    %v319 = vunpack.c.h.b16 %v281
    %v320 = vpack.c.b16 %v318, %v316
    %v321 = vpack.c.b16 %v319, %v317
    %324 = vmatprep.subr.bf16.mxu0 %v283
    %325 = vmatpush1.bf16.msra.mxu0 %v282
    %326 = vmatprep.subr.bf16.mxu0 %v285
    %327 = vmatpush1.bf16.msra.mxu0 %v284
    %328 = vmatprep.subr.bf16.mxu0 %v287
    %329 = vmatpush1.bf16.msra.mxu0 %v286
    %330 = vmatprep.subr.bf16.mxu0 %v289
    %331 = vmatpush1.bf16.msra.mxu0 %v288
    %332 = vmatprep.subr.bf16.mxu0 %v291
    %333 = vmatpush1.bf16.msra.mxu0 %v290
    %334 = vmatprep.subr.bf16.mxu0 %v293
    %335 = vmatpush1.bf16.msra.mxu0 %v292
    %336 = vmatprep.subr.bf16.mxu0 %v295
    %337 = vmatpush1.bf16.msra.mxu0 %v294
    %338 = vmatprep.subr.bf16.mxu0 %v297
    %339 = vmatpush1.bf16.msra.mxu0 %v296
    %340 = vmatprep.subr.bf16.mxu0 %v299
    %341 = vmatpush1.bf16.msra.mxu0 %v298
    %342 = vmatprep.subr.bf16.mxu0 %v301
    %343 = vmatpush1.bf16.msra.mxu0 %v300
    %344 = vmatprep.subr.bf16.mxu0 %v303
    %345 = vmatpush1.bf16.msra.mxu0 %v302
    %346 = vmatprep.subr.bf16.mxu0 %v305
    %347 = vmatpush1.bf16.msra.mxu0 %v304
    %348 = vmatprep.subr.bf16.mxu0 %v307
    %349 = vmatpush1.bf16.msra.mxu0 %v306
    %350 = vmatprep.subr.bf16.mxu0 %v309
    %351 = vmatpush1.bf16.msra.mxu0 %v308
    %352 = vmatprep.subr.bf16.mxu0 %v311
    %353 = vmatpush1.bf16.msra.mxu0 %v310
    %354 = vmatprep.subr.bf16.mxu0 %v313
    %355 = vmatpush1.bf16.msra.mxu0 %v312
    %356 = vmatprep.mubr.bf16.mxu0 %v321
    %357 = vmatmul.mubr.bf16.gmra.mrb[0].mxu0 %v320
    %v358 = vpop.f32.mrb[0].mxu0
    %v359 = vadd.f32 0.0, %v358
    %v360 = vpop.f32.mrb[0].mxu0
    %v361 = vadd.f32 0.0, %v360
    %v362 = vpop.f32.mrb[0].mxu0
    %v363 = vadd.f32 0.0, %v362
    %v364 = vpop.f32.mrb[0].mxu0
    %v365 = vadd.f32 0.0, %v364
    %366 = vdwg.mxu0
    %p367 = scmp.eq.s32.totalorder 0, 0
    // Predicated region
    $region26: #{tpu_custom_call.1} parent=1 // pred_check
      %p368 = pneg %p367
    $region27: #{tpu_custom_call.1} parent=1 // pred_check_branch
      %370 = sbr.rel (%p368) target = $region29
    $region28: #{tpu_custom_call.1} parent=1 // pred_region
      %371 = vst [vmem:[#allocation3] sm:$0xff] %v359
      %372 = vst [vmem:[#allocation3 + $0x8] sm:$0xff] %v361
      %373 = vst [vmem:[#allocation3 + $0x10] sm:$0xff] %v363
      %374 = vst [vmem:[#allocation3 + $0x18] sm:$0xff] %v365
    $region29: #{tpu_custom_call.1} parent=1 // pred_fallthru
      _
    %p375 = scmp.ne.s32.totalorder 0, 0
    // Predicated region
    $region30: #{tpu_custom_call.1} parent=1 // pred_check
      %p376 = pneg %p375
    $region31: #{tpu_custom_call.1} parent=1 // pred_check_branch
      %378 = sbr.rel (%p376) target = $region33
    $region32: #{tpu_custom_call.1} parent=1 // pred_region
      %v379 = vld [vmem:[#allocation3] sm:$0xff]
      %v380 = vld [vmem:[#allocation3 + $0x8] sm:$0xff]
      %v381 = vld [vmem:[#allocation3 + $0x10] sm:$0xff]
      %v382 = vld [vmem:[#allocation3 + $0x18] sm:$0xff]
      %v383 = vadd.f32 %v379, %v359
      %v384 = vadd.f32 %v380, %v361
      %v385 = vadd.f32 %v381, %v363
      %v386 = vadd.f32 %v382, %v365
      %387 = vst [vmem:[#allocation3] sm:$0xff] %v383
      %388 = vst [vmem:[#allocation3 + $0x8] sm:$0xff] %v384
      %389 = vst [vmem:[#allocation3 + $0x10] sm:$0xff] %v385
      %390 = vst [vmem:[#allocation3 + $0x18] sm:$0xff] %v386
    $region33: #{tpu_custom_call.1} parent=1 // pred_fallthru
      _
    // Predicated region
    $region34: #{tpu_custom_call.1} parent=1 // pred_check
      %p391 = pneg %p367
    $region35: #{tpu_custom_call.1} parent=1 // pred_check_branch
      %393 = sbr.rel (%p391) target = $region37
    $region36: #{tpu_custom_call.1} parent=1 // pred_region
      %v394 = vld [vmem:[#allocation3] sm:$0xff]
      %v395 = vld [vmem:[#allocation3 + $0x8] sm:$0xff]
      %v396 = vld [vmem:[#allocation3 + $0x10] sm:$0xff]
      %v397 = vld [vmem:[#allocation3 + $0x18] sm:$0xff]
      %398 = vst [vmem:[#allocation11] sm:$0xff] %v394
      %399 = vst [vmem:[#allocation11 + $0x8] sm:$0xff] %v395
      %400 = vst [vmem:[#allocation11 + $0x10] sm:$0xff] %v396
      %401 = vst [vmem:[#allocation11 + $0x18] sm:$0xff] %v397
    $region37: #{tpu_custom_call.1} parent=1 // pred_fallthru
      _
    // Predicated region
    $region38: #{tpu_custom_call.1} parent=1 // pred_check
      _
    $region39: #{tpu_custom_call.1} parent=1 // pred_check_branch
      %403 = sbr.rel (0) target = $region41
    $region40: #{tpu_custom_call.1} parent=1 // pred_region
      %s405 = ssub.s32 512, 512
      %406 = vsyncadd [#allocation6], %s405
      %s407 = sshll.u32 [#allocation11], 4
      %s408 = int_to_ptr.vmem [resolvable:$true] %s407
      %413 = dma.vmem_to_hbm [thread:$0]  %s408, 512, %s3, [#allocation6], 256, 256, 16
    $region41: #{tpu_custom_call.1} parent=1 // pred_fallthru
      _
    // Predicated region
    $region42: #{tpu_custom_call.1} parent=1 // pred_check
      _
    $region43: #{tpu_custom_call.1} parent=1 // pred_check_branch
      %415 = sbr.rel (0) target = $region45
    $region44: #{tpu_custom_call.1} parent=1 // pred_region
      %416 = dma.done [#allocation6], 512
    $region45: #{tpu_custom_call.1} parent=1 // pred_fallthru
      _
    %417 = vsyncpa [#allocation5], 1
    %418 = vsyncpa [#allocation10], 1
    %419 = vsyncpa [#allocation6], 1
    %420 = vsyncpa [#allocation7], 1

</llo_original>
